<compile_context>
chip_gen: v7x
topology: tpu7x:2x2x1
jax: 0.10.0
libtpu: 0.0.40
codegen_flags: <defaults>
</compile_context>

<pallas_src>
import functools
import math

import jax
import jax.numpy as jnp
from jax import lax
from jax.experimental import pallas as pl
from jax.experimental.pallas import tpu as pltpu


def _round_up(x, m):
    return ((x + m - 1) // m) * m


# --------------------------------------------------------------------------
# Kernel 1: per-class weight norms, tiled over the class dimension.
# --------------------------------------------------------------------------
def _wnorm_kernel(w_ref, out_ref):
    w = w_ref[...].astype(jnp.float32)                               # (TC, D)
    out_ref[...] = jnp.sqrt(jnp.sum(w * w, axis=1, keepdims=True))   # (TC, 1)


def _weight_norms(w_pad, tc):
    c_pad, d = w_pad.shape
    norms_col = pl.pallas_call(
        _wnorm_kernel,
        out_shape=jax.ShapeDtypeStruct((c_pad, 1), jnp.float32),
        grid_spec=pltpu.PrefetchScalarGridSpec(
            num_scalar_prefetch=0,
            grid=(c_pad // tc,),
            in_specs=[pl.BlockSpec((tc, d), lambda j: (j, 0))],
            out_specs=pl.BlockSpec((tc, 1), lambda j: (j, 0)),
        ),
        compiler_params=pltpu.CompilerParams(
            dimension_semantics=("parallel",)),
    )(w_pad)
    return norms_col.reshape(1, c_pad)                               # (1, C_pad)


# --------------------------------------------------------------------------
# Kernel 2: main MarginCosineProduct tile kernel.
# --------------------------------------------------------------------------
def _mcp_kernel(x_ref, w_ref, wnorm_ref, label_ref, out_ref, *, s, m, eps, approx):
    x = x_ref[...].astype(jnp.float32)                               # (TB, D)
    w = w_ref[...].astype(jnp.float32)                               # (TC, D)

    # x @ W^T on the MXU; W consumed in its stored (C, D) layout (NT dot).
    ip = lax.dot_general(
        x, w,
        dimension_numbers=(((1,), (1,)), ((), ())),
        preferred_element_type=jnp.float32,
    )                                                                # (TB, TC)

    # Row norms of the small x tile (cheap VPU filler under the MXU);
    # class norms are precomputed once.
    x_norm = jnp.sqrt(jnp.sum(x * x, axis=1, keepdims=True))         # (TB, 1)
    w_norm = wnorm_ref[...]                                          # (1, TC)

    denom = jnp.maximum(x_norm * w_norm, eps)                        # clamp BEFORE recip
    cosine = ip * pl.reciprocal(denom, approx=approx)                # EUP recip + VPU mul

    # Fused one-hot + margin + scale: where(col == label, s*cos - s*m, s*cos)
    tb, tc = out_ref.shape
    col0 = pl.program_id(1) * tc
    col_ids = col0 + lax.broadcasted_iota(jnp.int32, (tb, tc), 1)
    labels = label_ref[...]                                          # (TB, 1) int32
    scaled = s * cosine
    out_ref[...] = jnp.where(col_ids == labels, scaled - (s * m), scaled)


# --------------------------------------------------------------------------
# Wrapper
# --------------------------------------------------------------------------
def margin_cosine_product(x, weight, label, s=30.0, m=0.4, eps=1e-8,
                          block_b=128, block_c=2048, approx_reciprocal=True):
    """x: (B, D) float, weight: (C, D) float, label: (B,) int. Returns (B, C) f32."""
    B, D = x.shape
    C, D2 = weight.shape
    assert D == D2

    # Tile sizes: TB multiple of 8 (f32 sublanes), TC multiple of 128 (lanes).
    tb = min(_round_up(B, 8), _round_up(block_b, 8))
    tc = min(_round_up(C, 128), _round_up(block_c, 128))
    b_pad = _round_up(B, tb)
    c_pad = _round_up(C, tc)

    x_p = x if b_pad == B else jnp.pad(x, ((0, b_pad - B), (0, 0)))
    w_p = weight if c_pad == C else jnp.pad(weight, ((0, c_pad - C), (0, 0)))
    lab = jnp.full((b_pad, 1), -1, dtype=jnp.int32)
    lab = lab.at[:B, 0].set(label.astype(jnp.int32))

    # Per-class weight norms computed once (not per B-tile).  Zero-padded
    # classes get norm 0 -> denom clamps to eps -> cosine 0 (sliced off anyway).
    w_norm = _weight_norms(w_p, tc)                                  # (1, C_pad)

    # VMEM budget: double-buffered input tiles + output tiles, clamped so it
    # is valid on every generation (>= 32 MiB scoped, < v7x's 64 MiB physical).
    est = 2 * 4 * (tb * D + tc * D + tc + tb) + 2 * 4 * tb * tc
    vmem_limit = int(min(max(2 * est, 32 * 1024 * 1024), 56 * 1024 * 1024))

    kernel = functools.partial(
        _mcp_kernel, s=float(s), m=float(m), eps=float(eps),
        approx=bool(approx_reciprocal))

    out_pad = pl.pallas_call(
        kernel,
        out_shape=jax.ShapeDtypeStruct((b_pad, c_pad), jnp.float32),
        grid_spec=pltpu.PrefetchScalarGridSpec(
            num_scalar_prefetch=0,
            grid=(b_pad // tb, c_pad // tc),
            in_specs=[
                pl.BlockSpec((tb, D), lambda i, j: (i, 0)),     # x tile (resident over j)
                pl.BlockSpec((tc, D), lambda i, j: (j, 0)),     # W tile (streamed)
                pl.BlockSpec((1, tc), lambda i, j: (0, j)),     # ||W|| tile
                pl.BlockSpec((tb, 1), lambda i, j: (i, 0)),     # labels
            ],
            out_specs=pl.BlockSpec((tb, tc), lambda i, j: (i, j)),
        ),
        compiler_params=pltpu.CompilerParams(
            dimension_semantics=("parallel", "parallel"),
            vmem_limit_bytes=vmem_limit),
        cost_estimate=pl.CostEstimate(
            flops=2 * b_pad * c_pad * D,
            transcendentals=b_pad * c_pad + b_pad + c_pad,
            bytes_accessed=4 * (b_pad * D + c_pad * D + b_pad * c_pad + c_pad)),
    )(x_p, w_p, w_norm, lab)

    return out_pad[:B, :C]


def _xavier_uniform(key, shape):
    fan_out, fan_in = shape
    bound = math.sqrt(6.0 / (fan_in + fan_out))
    return jax.random.uniform(key, shape, jnp.float32, -bound, bound)


if __name__ == "__main__":
    # Small but grid-exercising shapes: B not a multiple of 8, C not a
    # multiple of 128, small tiles -> 3x3 grid with padding on both axes.
    B = 20
    in_features = 32
    out_features = 300

    key = jax.random.PRNGKey(0)
    k_x, k_w, k_l = jax.random.split(key, 3)

    x = jax.random.normal(k_x, (B, in_features), jnp.float32)
    weight = _xavier_uniform(k_w, (out_features, in_features))
    label = jax.random.randint(k_l, (B,), 0, out_features, jnp.int32)

    # Pure-JAX reference (same semantics as the PyTorch module).
    ip = x @ weight.T
    w1 = jnp.linalg.norm(x, axis=1)
    w2 = jnp.linalg.norm(weight, axis=1)
    cosine = ip / jnp.maximum(jnp.outer(w1, w2), 1e-8)
    one_hot = jax.nn.one_hot(label, out_features, dtype=jnp.float32)
    ref = 30.0 * (cosine - one_hot * 0.4)

    # Default (performance) path: approximate EUP reciprocal.
    out = margin_cosine_product(x, weight, label, s=30.0, m=0.4,
                                block_b=8, block_c=128)
    out = jax.block_until_ready(out)
    assert out.shape == (B, out_features)
    # s=30 amplifies the approx-reciprocal error; sanity bound still far
    # below the margin offset (s*m = 12), so logic bugs would be caught.
    assert bool(jnp.max(jnp.abs(out - ref)) < 0.5)

    # Exact-reciprocal path: tight numerical check.
    out_exact = margin_cosine_product(x, weight, label, s=30.0, m=0.4,
                                      block_b=8, block_c=128,
                                      approx_reciprocal=False)
    out_exact = jax.block_until_ready(out_exact)
    assert jnp.allclose(out_exact, ref, atol=2e-4, rtol=2e-4)

    print("KERNEL_OK")
</pallas_src>

<mosaic_0001>
module attributes {stable_mosaic.version = 11 : i64} {
  func.func @_wnorm_kernel(%arg0: i32, %arg1: memref<128x32xf32, #tpu.memory_space<vmem>>, %arg2: memref<128x1xf32, #tpu.memory_space<vmem>>) attributes {dimension_semantics = [#tpu.dimension_semantics<parallel>], iteration_bounds = array<i64: 3>, scalar_prefetch = 0 : i64, scratch_operands = 0 : i64, tpu.core_type = #tpu.core_type<tc>, window_params = [{transform_indices = @transform_0, window_bounds = array<i64: 128, 32>}, {transform_indices = @transform_1, window_bounds = array<i64: 128, 1>}]} {
    %c0 = arith.constant 0 : index
    %c0_0 = arith.constant 0 : index
    %0 = vector.load %arg1[%c0, %c0_0] : memref<128x32xf32, #tpu.memory_space<vmem>>, vector<128x32xf32>
    %1 = arith.mulf %0, %0 : vector<128x32xf32>
    %cst = arith.constant dense<0.000000e+00> : vector<128xf32>
    %2 = vector.multi_reduction <add>, %1, %cst [1] : vector<128x32xf32> to vector<128xf32>
    %3 = vector.shape_cast %2 : vector<128xf32> to vector<128x1xf32>
    %4 = math.sqrt %3 : vector<128x1xf32>
    %c0_1 = arith.constant 0 : index
    %c0_2 = arith.constant 0 : index
    %5 = vector.load %arg2[%c0_1, %c0_2] : memref<128x1xf32, #tpu.memory_space<vmem>>, vector<128x1xf32>
    tpu.vector_store %arg2[%c0_1, %c0_2], %4 {strides = array<i32>} : memref<128x1xf32, #tpu.memory_space<vmem>>, vector<128x1xf32>,
    return
  }
  func.func @transform_0(%arg0: i32) -> (i32, i32) {
    %c0_i32 = arith.constant 0 : i32
    %c0_i32_0 = arith.constant 0 : i32
    return %arg0, %c0_i32 : i32, i32
  }
  func.func @transform_1(%arg0: i32) -> (i32, i32) {
    %c0_i32 = arith.constant 0 : i32
    %c0_i32_0 = arith.constant 0 : i32
    return %arg0, %c0_i32 : i32, i32
  }
}

</mosaic_0001>

<llo_original>
// kernel: tpu_custom_call.1
$region0: #{tpu_custom_call.1}
  #allocation0 [shape = 'u32[]', space=smem, size = 0x4, offset = 0x4, fixed_abs, tag = 'smem constant byte address 0x4 - core index']
  #allocation1 [shape = 'u32[144,128]{1,0:T(1,128)}', space=vmem, size = 0x12000, scoped, tag = 'internal scratch']
  %s0 = inlined_call_operand.vmem [shape: f32[384,32], index: 0, kind: input, shape index: {}]
  %s1 = inlined_call_operand.vmem [shape: f32[384,1], index: 1, kind: output, shape index: {}]
  %s2 = sld [smem:[#allocation0]]
  $region37: #{tpu_custom_call.1} parent=0
    _
  %s4 = ssub.s32 1, %s2
  %s5 = scalar_select 0, %s4, %s2
  loop: start=0, step=1, limit=5
  $region2: #{tpu_custom_call.1} parent=0 // loop_pre_header
    _
  $region3: #{tpu_custom_call.1} parent=0 // loop_header
    %s7 = sphi 0, %s11
    %p8 = scmp.ge.s32.totalorder %s7, 5
    %s17 = sphi 0, %s19
    %s20 = sphi 0, %s17
    %s21 = sphi 0, %s20
    %s37 = sphi 0, %s21
    %s43 = sphi 0, %s45
    %s46 = sphi 0, %s43
    %s47 = sphi 0, %s46
    %s63 = sphi 0, %s47
  $region4: #{tpu_custom_call.1} parent=0 // loop_header_branch
    %10 = sbr.rel (%p8) target = $region8
  $region5: #{tpu_custom_call.1} parent=0 // loop_body
    %s12 = ssub.s32 %s7, 1
    %s13 = ssub.s32 %s7, 2
    %s14 = sadd.s32 %s7, 1
    %s15 = ssub.s32 %s7, %s14
    %p16 = scmp.eq.s32.totalorder %s15, 0
    %s18 = sadd.s32 %s17, 1
    %s19 = scalar_select %p16, %s17, %s18
    %p22 = pneg %p16
    %p23 = scmp.eq.s32.totalorder %s7, 2
    %p24 = por %p22, %p23
    %p25 = scmp.ne.s32.totalorder %s17, %s20
    %p26 = scmp.eq.s32.totalorder %s7, 0
    %p27 = por %p25, %p26
    %p28 = scmp.ne.s32.totalorder %s17, %s20
    %p29 = scmp.eq.s32.totalorder %s12, 2
    %p30 = por %p28, %p29
    %p31 = scmp.ne.s32.totalorder %s20, %s21
    %p32 = scmp.eq.s32.totalorder %s12, 0
    %p33 = por %p31, %p32
    %p34 = scmp.ne.s32.totalorder %s20, %s21
    %p35 = scmp.eq.s32.totalorder %s13, 2
    %p36 = por %p34, %p35
    %p38 = scmp.ne.s32.totalorder %s21, %s37
    %p39 = scmp.eq.s32.totalorder %s13, 0
    %p40 = por %p38, %p39
    %s41 = ssub.s32 %s7, %s14
    %p42 = scmp.eq.s32.totalorder %s41, 0
    %s44 = sadd.s32 %s43, 1
    %s45 = scalar_select %p42, %s43, %s44
    %p48 = pneg %p42
    %p49 = scmp.eq.s32.totalorder %s7, 2
    %p50 = por %p48, %p49
    %p51 = scmp.ne.s32.totalorder %s43, %s46
    %p52 = scmp.eq.s32.totalorder %s7, 0
    %p53 = por %p51, %p52
    %p54 = scmp.ne.s32.totalorder %s43, %s46
    %p55 = scmp.eq.s32.totalorder %s12, 2
    %p56 = por %p54, %p55
    %p57 = scmp.ne.s32.totalorder %s46, %s47
    %p58 = scmp.eq.s32.totalorder %s12, 0
    %p59 = por %p57, %p58
    %p60 = scmp.ne.s32.totalorder %s46, %s47
    %p61 = scmp.eq.s32.totalorder %s13, 2
    %p62 = por %p60, %p61
    %p64 = scmp.ne.s32.totalorder %s47, %s63
    %p65 = scmp.eq.s32.totalorder %s13, 0
    %p66 = por %p64, %p65
    %p67 = scmp.le.s32.totalorder 1, %s7
    %p68 = scmp.lt.s32.totalorder %s7, 4
    %p69 = pnand %p67, %p68
    %p70 = pneg %p69
    // Predicated region
    $region9: #{tpu_custom_call.1} parent=5 // pred_check
      _
    $region10: #{tpu_custom_call.1} parent=5 // pred_check_branch
      %72 = sbr.rel (%p69) target = $region12
    $region11: #{tpu_custom_call.1} parent=5 // pred_region
      %s73 = ssub.s32 %s7, 1
    $region12: #{tpu_custom_call.1} parent=5 // pred_fallthru
      _
    %p74 = scmp.lt.s32.totalorder %s7, 3
    // Predicated region
    $region13: #{tpu_custom_call.1} parent=5 // pred_check
      %p75 = pneg %p74
    $region14: #{tpu_custom_call.1} parent=5 // pred_check_branch
      %77 = sbr.rel (%p75) target = $region16
    $region15: #{tpu_custom_call.1} parent=5 // pred_region
      // Predicated region
      $region17: #{tpu_custom_call.1} parent=15 // pred_check
        %p78 = pneg %p27
      $region18: #{tpu_custom_call.1} parent=15 // pred_check_branch
        %80 = sbr.rel (%p78) target = $region20
      $region19: #{tpu_custom_call.1} parent=15 // pred_region
        %s81 = smul.u32 16, %s7
        %p82 = scmp.lt.s32.totalorder %s81, 47
        %s83 = scalar_select %p82, %s81, 47
        %s84 = smul.addr %s83, 8
        %s85 = scalar_lea.vmem %s0, %s84
        %s86 = smul.u32 16, %s7
      $region20: #{tpu_custom_call.1} parent=15 // pred_fallthru
        _
    $region16: #{tpu_custom_call.1} parent=5 // pred_fallthru
      _
    %p87 = scmp.le.s32.totalorder 1, %s7
    %p88 = scmp.lt.s32.totalorder %s7, 4
    %p89 = pnand %p87, %p88
    %p90 = pneg %p89
    // Predicated region
    $region21: #{tpu_custom_call.1} parent=5 // pred_check
      _
    $region22: #{tpu_custom_call.1} parent=5 // pred_check_branch
      %92 = sbr.rel (%p89) target = $region24
    $region23: #{tpu_custom_call.1} parent=5 // pred_region
      %s93 = ssub.s32 %s7, 1
      %s94 = smul.u32 16, %s12
      %p95 = scmp.lt.s32.totalorder %s94, 47
      %s96 = scalar_select %p95, %s94, 47
      %s97 = smul.addr %s96, 8
      %s98 = scalar_lea.vmem %s0, %s97
      %p99 = pneg %p33
      %p100 = pneg %p30
      %p101 = pneg %p59
      %p102 = pneg %p56
      %s103 = smul.u32 16, %s12
      %p104 = scmp.lt.s32.totalorder %s103, 47
      %s105 = scalar_select %p104, %s103, 47
      %s106 = smul.addr %s105, 8
      %s107 = scalar_lea.vmem %s1, %s106
      %s108 = smul.u32 16, %s12
      %p109 = scmp.lt.s32.totalorder %s108, 47
      %s110 = scalar_select %p109, %s108, 47
      %s111 = smul.addr %s110, 8
      %s112 = scalar_lea.vmem %s0, %s111
      %s113 = smul.u32 16, %s12
      %s114 = smul.u32 16, %s12
      %p115 = scmp.lt.s32.totalorder %s114, 47
      %s116 = scalar_select %p115, %s114, 47
      %s117 = smul.addr %s116, 8
      %s118 = scalar_lea.vmem %s1, %s117
      %s119 = smul.u32 16, %s12
      %v120 = vld [vmem:[%s112] sm:$0xff]
      %v121 = vld [vmem:[%s112 + $0x8] sm:$0xff]
      %v122 = vld [vmem:[%s112 + $0x10] sm:$0xff]
      %v123 = vld [vmem:[%s112 + $0x18] sm:$0xff]
      %v124 = vld [vmem:[%s112 + $0x20] sm:$0xff]
      %v125 = vld [vmem:[%s112 + $0x28] sm:$0xff]
      %v126 = vld [vmem:[%s112 + $0x30] sm:$0xff]
      %v127 = vld [vmem:[%s112 + $0x38] sm:$0xff]
      %v128 = vld [vmem:[%s112 + $0x40] sm:$0xff]
      %v129 = vld [vmem:[%s112 + $0x48] sm:$0xff]
      %v130 = vld [vmem:[%s112 + $0x50] sm:$0xff]
      %v131 = vld [vmem:[%s112 + $0x58] sm:$0xff]
      %v132 = vld [vmem:[%s112 + $0x60] sm:$0xff]
      %v133 = vld [vmem:[%s112 + $0x68] sm:$0xff]
      %v134 = vld [vmem:[%s112 + $0x70] sm:$0xff]
      %v135 = vld [vmem:[%s112 + $0x78] sm:$0xff]
      %v136 = vmul.f32 %v120, %v120
      %v137 = vmul.f32 %v121, %v121
      %v138 = vmul.f32 %v122, %v122
      %v139 = vmul.f32 %v123, %v123
      %v140 = vmul.f32 %v124, %v124
      %v141 = vmul.f32 %v125, %v125
      %v142 = vmul.f32 %v126, %v126
      %v143 = vmul.f32 %v127, %v127
      %v144 = vmul.f32 %v128, %v128
      %v145 = vmul.f32 %v129, %v129
      %v146 = vmul.f32 %v130, %v130
      %v147 = vmul.f32 %v131, %v131
      %v148 = vmul.f32 %v132, %v132
      %v149 = vmul.f32 %v133, %v133
      %v150 = vmul.f32 %v134, %v134
      %v151 = vmul.f32 %v135, %v135
      %vm152 = vcmask 261120
      %v153 = vsel %vm152, %v136, 0.0
      %154 = vadd.xlane.f32.xlu0 %v153
      %v155 = vpop.xlane.xlu0 %154
      %v156 = vsel %vm152, %v137, 0.0
      %157 = vadd.xlane.f32.xlu0 %v156
      %v158 = vpop.xlane.xlu0 %157
      %v159 = vsel %vm152, %v138, 0.0
      %160 = vadd.xlane.f32.xlu0 %v159
      %v161 = vpop.xlane.xlu0 %160
      %v162 = vsel %vm152, %v139, 0.0
      %163 = vadd.xlane.f32.xlu0 %v162
      %v164 = vpop.xlane.xlu0 %163
      %v165 = vsel %vm152, %v140, 0.0
      %166 = vadd.xlane.f32.xlu0 %v165
      %v167 = vpop.xlane.xlu0 %166
      %v168 = vsel %vm152, %v141, 0.0
      %169 = vadd.xlane.f32.xlu0 %v168
      %v170 = vpop.xlane.xlu0 %169
      %v171 = vsel %vm152, %v142, 0.0
      %172 = vadd.xlane.f32.xlu0 %v171
      %v173 = vpop.xlane.xlu0 %172
      %v174 = vsel %vm152, %v143, 0.0
      %175 = vadd.xlane.f32.xlu0 %v174
      %v176 = vpop.xlane.xlu0 %175
      %v177 = vsel %vm152, %v144, 0.0
      %178 = vadd.xlane.f32.xlu0 %v177
      %v179 = vpop.xlane.xlu0 %178
      %v180 = vsel %vm152, %v145, 0.0
      %181 = vadd.xlane.f32.xlu0 %v180
      %v182 = vpop.xlane.xlu0 %181
      %v183 = vsel %vm152, %v146, 0.0
      %184 = vadd.xlane.f32.xlu0 %v183
      %v185 = vpop.xlane.xlu0 %184
      %v186 = vsel %vm152, %v147, 0.0
      %187 = vadd.xlane.f32.xlu0 %v186
      %v188 = vpop.xlane.xlu0 %187
      %v189 = vsel %vm152, %v148, 0.0
      %190 = vadd.xlane.f32.xlu0 %v189
      %v191 = vpop.xlane.xlu0 %190
      %v192 = vsel %vm152, %v149, 0.0
      %193 = vadd.xlane.f32.xlu0 %v192
      %v194 = vpop.xlane.xlu0 %193
      %v195 = vsel %vm152, %v150, 0.0
      %196 = vadd.xlane.f32.xlu0 %v195
      %v197 = vpop.xlane.xlu0 %196
      %v198 = vsel %vm152, %v151, 0.0
      %199 = vadd.xlane.f32.xlu0 %v198
      %v200 = vpop.xlane.xlu0 %199
      %v201 = vrsqrt.pop %v155
      %v202 = vmul.f32 %v155, %v201
      %vm203 = vcmp.eq.f32.partialorder %v155, inf
      %v204 = vsel %vm203, %v155, %v202
      %vm205 = vcmp.eq.f32.partialorder %v155, 0.0
      %v206 = vand.u32 %v155, 2147483648
      %v207 = vsel %vm205, %v206, %v204
      %v208 = vrsqrt.pop %v158
      %v209 = vmul.f32 %v158, %v208
      %vm210 = vcmp.eq.f32.partialorder %v158, inf
      %v211 = vsel %vm210, %v158, %v209
      %vm212 = vcmp.eq.f32.partialorder %v158, 0.0
      %v213 = vand.u32 %v158, 2147483648
      %v214 = vsel %vm212, %v213, %v211
      %v215 = vrsqrt.pop %v161
      %v216 = vmul.f32 %v161, %v215
      %vm217 = vcmp.eq.f32.partialorder %v161, inf
      %v218 = vsel %vm217, %v161, %v216
      %vm219 = vcmp.eq.f32.partialorder %v161, 0.0
      %v220 = vand.u32 %v161, 2147483648
      %v221 = vsel %vm219, %v220, %v218
      %v222 = vrsqrt.pop %v164
      %v223 = vmul.f32 %v164, %v222
      %vm224 = vcmp.eq.f32.partialorder %v164, inf
      %v225 = vsel %vm224, %v164, %v223
      %vm226 = vcmp.eq.f32.partialorder %v164, 0.0
      %v227 = vand.u32 %v164, 2147483648
      %v228 = vsel %vm226, %v227, %v225
      %v229 = vrsqrt.pop %v167
      %v230 = vmul.f32 %v167, %v229
      %vm231 = vcmp.eq.f32.partialorder %v167, inf
      %v232 = vsel %vm231, %v167, %v230
      %vm233 = vcmp.eq.f32.partialorder %v167, 0.0
      %v234 = vand.u32 %v167, 2147483648
      %v235 = vsel %vm233, %v234, %v232
      %v236 = vrsqrt.pop %v170
      %v237 = vmul.f32 %v170, %v236
      %vm238 = vcmp.eq.f32.partialorder %v170, inf
      %v239 = vsel %vm238, %v170, %v237
      %vm240 = vcmp.eq.f32.partialorder %v170, 0.0
      %v241 = vand.u32 %v170, 2147483648
      %v242 = vsel %vm240, %v241, %v239
      %v243 = vrsqrt.pop %v173
      %v244 = vmul.f32 %v173, %v243
      %vm245 = vcmp.eq.f32.partialorder %v173, inf
      %v246 = vsel %vm245, %v173, %v244
      %vm247 = vcmp.eq.f32.partialorder %v173, 0.0
      %v248 = vand.u32 %v173, 2147483648
      %v249 = vsel %vm247, %v248, %v246
      %v250 = vrsqrt.pop %v176
      %v251 = vmul.f32 %v176, %v250
      %vm252 = vcmp.eq.f32.partialorder %v176, inf
      %v253 = vsel %vm252, %v176, %v251
      %vm254 = vcmp.eq.f32.partialorder %v176, 0.0
      %v255 = vand.u32 %v176, 2147483648
      %v256 = vsel %vm254, %v255, %v253
      %v257 = vrsqrt.pop %v179
      %v258 = vmul.f32 %v179, %v257
      %vm259 = vcmp.eq.f32.partialorder %v179, inf
      %v260 = vsel %vm259, %v179, %v258
      %vm261 = vcmp.eq.f32.partialorder %v179, 0.0
      %v262 = vand.u32 %v179, 2147483648
      %v263 = vsel %vm261, %v262, %v260
      %v264 = vrsqrt.pop %v182
      %v265 = vmul.f32 %v182, %v264
      %vm266 = vcmp.eq.f32.partialorder %v182, inf
      %v267 = vsel %vm266, %v182, %v265
      %vm268 = vcmp.eq.f32.partialorder %v182, 0.0
      %v269 = vand.u32 %v182, 2147483648
      %v270 = vsel %vm268, %v269, %v267
      %v271 = vrsqrt.pop %v185
      %v272 = vmul.f32 %v185, %v271
      %vm273 = vcmp.eq.f32.partialorder %v185, inf
      %v274 = vsel %vm273, %v185, %v272
      %vm275 = vcmp.eq.f32.partialorder %v185, 0.0
      %v276 = vand.u32 %v185, 2147483648
      %v277 = vsel %vm275, %v276, %v274
      %v278 = vrsqrt.pop %v188
      %v279 = vmul.f32 %v188, %v278
      %vm280 = vcmp.eq.f32.partialorder %v188, inf
      %v281 = vsel %vm280, %v188, %v279
      %vm282 = vcmp.eq.f32.partialorder %v188, 0.0
      %v283 = vand.u32 %v188, 2147483648
      %v284 = vsel %vm282, %v283, %v281
      %v285 = vrsqrt.pop %v191
      %v286 = vmul.f32 %v191, %v285
      %vm287 = vcmp.eq.f32.partialorder %v191, inf
      %v288 = vsel %vm287, %v191, %v286
      %vm289 = vcmp.eq.f32.partialorder %v191, 0.0
      %v290 = vand.u32 %v191, 2147483648
      %v291 = vsel %vm289, %v290, %v288
      %v292 = vrsqrt.pop %v194
      %v293 = vmul.f32 %v194, %v292
      %vm294 = vcmp.eq.f32.partialorder %v194, inf
      %v295 = vsel %vm294, %v194, %v293
      %vm296 = vcmp.eq.f32.partialorder %v194, 0.0
      %v297 = vand.u32 %v194, 2147483648
      %v298 = vsel %vm296, %v297, %v295
      %v299 = vrsqrt.pop %v197
      %v300 = vmul.f32 %v197, %v299
      %vm301 = vcmp.eq.f32.partialorder %v197, inf
      %v302 = vsel %vm301, %v197, %v300
      %vm303 = vcmp.eq.f32.partialorder %v197, 0.0
      %v304 = vand.u32 %v197, 2147483648
      %v305 = vsel %vm303, %v304, %v302
      %v306 = vrsqrt.pop %v200
      %v307 = vmul.f32 %v200, %v306
      %vm308 = vcmp.eq.f32.partialorder %v200, inf
      %v309 = vsel %vm308, %v200, %v307
      %vm310 = vcmp.eq.f32.partialorder %v200, 0.0
      %v311 = vand.u32 %v200, 2147483648
      %v312 = vsel %vm310, %v311, %v309
      %vm313 = vcmask 7168
      %314 = vst.msk [vmem:[%s118] sm:$0xff] %vm313, %v207
      %315 = vst.msk [vmem:[%s118 + $0x8] sm:$0xff] %vm313, %v214
      %316 = vst.msk [vmem:[%s118 + $0x10] sm:$0xff] %vm313, %v221
      %317 = vst.msk [vmem:[%s118 + $0x18] sm:$0xff] %vm313, %v228
      %318 = vst.msk [vmem:[%s118 + $0x20] sm:$0xff] %vm313, %v235
      %319 = vst.msk [vmem:[%s118 + $0x28] sm:$0xff] %vm313, %v242
      %320 = vst.msk [vmem:[%s118 + $0x30] sm:$0xff] %vm313, %v249
      %321 = vst.msk [vmem:[%s118 + $0x38] sm:$0xff] %vm313, %v256
      %322 = vst.msk [vmem:[%s118 + $0x40] sm:$0xff] %vm313, %v263
      %323 = vst.msk [vmem:[%s118 + $0x48] sm:$0xff] %vm313, %v270
      %324 = vst.msk [vmem:[%s118 + $0x50] sm:$0xff] %vm313, %v277
      %325 = vst.msk [vmem:[%s118 + $0x58] sm:$0xff] %vm313, %v284
      %326 = vst.msk [vmem:[%s118 + $0x60] sm:$0xff] %vm313, %v291
      %327 = vst.msk [vmem:[%s118 + $0x68] sm:$0xff] %vm313, %v298
      %328 = vst.msk [vmem:[%s118 + $0x70] sm:$0xff] %vm313, %v305
      %329 = vst.msk [vmem:[%s118 + $0x78] sm:$0xff] %vm313, %v312
      %s330 = smul.u32 16, %s12
      %p331 = scmp.lt.s32.totalorder %s330, 47
      %s332 = scalar_select %p331, %s330, 47
      %s333 = smul.addr %s332, 8
      %s334 = scalar_lea.vmem %s1, %s333
      // Predicated region
      $region25: #{tpu_custom_call.1} parent=23 // pred_check
        %p335 = pneg %p56
      $region26: #{tpu_custom_call.1} parent=23 // pred_check_branch
        %337 = sbr.rel (%p335) target = $region28
      $region27: #{tpu_custom_call.1} parent=23 // pred_region
        %s338 = smul.u32 16, %s12
      $region28: #{tpu_custom_call.1} parent=23 // pred_fallthru
        _
    $region24: #{tpu_custom_call.1} parent=5 // pred_fallthru
      _
    %p339 = scmp.le.s32.totalorder 2, %s7
    // Predicated region
    $region29: #{tpu_custom_call.1} parent=5 // pred_check
      %p340 = pneg %p339
    $region30: #{tpu_custom_call.1} parent=5 // pred_check_branch
      %342 = sbr.rel (%p340) target = $region32
    $region31: #{tpu_custom_call.1} parent=5 // pred_region
      %s343 = ssub.s32 %s7, 2
      // Predicated region
      $region33: #{tpu_custom_call.1} parent=31 // pred_check
        %p344 = pneg %p62
      $region34: #{tpu_custom_call.1} parent=31 // pred_check_branch
        %346 = sbr.rel (%p344) target = $region36
      $region35: #{tpu_custom_call.1} parent=31 // pred_region
        %s347 = smul.u32 16, %s13
        %p348 = scmp.lt.s32.totalorder %s347, 47
        %s349 = scalar_select %p348, %s347, 47
        %s350 = smul.addr %s349, 8
        %s351 = scalar_lea.vmem %s1, %s350
      $region36: #{tpu_custom_call.1} parent=31 // pred_fallthru
        _
    $region32: #{tpu_custom_call.1} parent=5 // pred_fallthru
      _
  $region6: #{tpu_custom_call.1} parent=0 // loop_footer
    %s11 = sadd.s32 1, %s7
  $region7: #{tpu_custom_call.1} parent=0 // loop_footer_branch
    %6 = sbr.rel target = $region3
  $region8: #{tpu_custom_call.1} parent=0 // loop_exit
    _

</llo_original>
